<compile_context>
chip_gen: v7x
topology: tpu7x:2x2x1
jax: 0.10.0
libtpu: 0.0.40
codegen_flags: <defaults>
</compile_context>

<pallas_src>
import functools
import math

import jax
import jax.numpy as jnp
from jax.experimental import pallas as pl
from jax.experimental.pallas import tpu as pltpu

_LANE = 128
_SUBLANE = 8


def _round_up(n, m):
    return ((n + m - 1) // m) * m


def _cdiv(a, b):
    return -(-a // b)


def _leaky_relu(x, negative_slope=0.01):
    # One vmul + one vmax on the VPU (cheaper than compare + select).
    return jnp.maximum(x, negative_slope * x)


def _decoder_kernel(x_ref,
                    w1_ref, b1_ref,
                    w2_ref, b2_ref,
                    w3_ref, b3_ref,
                    w4_ref, b4_ref,
                    o_ref):
    """Fused dec_nn.  Grid = (batch tiles, output-feature tiles).

    Layers 1-3 are tiny (<= 256 wide, bf16) and recomputed per N tile; layer 4
    uses the (256, tn) slice of w4 selected by the N grid index.
    """
    x = x_ref[...].astype(jnp.bfloat16)

    h = jnp.dot(x, w1_ref[...], preferred_element_type=jnp.float32) + b1_ref[...]
    h = _leaky_relu(h).astype(jnp.bfloat16)            # Dropout(0.2) == id (eval)

    h = jnp.dot(h, w2_ref[...], preferred_element_type=jnp.float32) + b2_ref[...]
    h = _leaky_relu(h).astype(jnp.bfloat16)            # Dropout(0.3) == id (eval)

    h = jnp.dot(h, w3_ref[...], preferred_element_type=jnp.float32) + b3_ref[...]
    h = _leaky_relu(h).astype(jnp.bfloat16)            # Dropout(0.4) == id (eval)

    h = jnp.dot(h, w4_ref[...], preferred_element_type=jnp.float32) + b4_ref[...]
    o_ref[...] = jnp.maximum(h, 0.0).astype(o_ref.dtype)  # Dropout(0.5)==id, ReLU


def init_decoder_params(key, n_features, z_dim, dtype=jnp.float32):
    """Deterministic init matching nn.Linear's default U(-1/sqrt(fan_in), +)."""
    dims = [z_dim, 50, 100, 200, n_features]
    params = []
    for i in range(4):
        fan_in, fan_out = dims[i], dims[i + 1]
        key, kw, kb = jax.random.split(key, 3)
        bound = 1.0 / math.sqrt(fan_in)
        w = jax.random.uniform(kw, (fan_in, fan_out), dtype, -bound, bound)
        b = jax.random.uniform(kb, (1, fan_out), dtype, -bound, bound)
        params.append((w, b))
    return params


def pad_decoder_params(params):
    """Zero-pad every layer's output width to a multiple of 128; weights -> bf16.

    Padded weight columns / bias entries are zero, so padded activations are
    exactly 0 through leaky-ReLU/ReLU and the next layer's padded input rows
    contribute nothing: results are unchanged.  Weights are stored in bf16
    (native MXU dtype); biases stay f32 for an exact add after f32 accumulation.
    """
    padded = []
    prev_in = params[0][0].shape[0]          # z_dim (contraction dim of layer 1)
    for (w, b) in params:
        fan_in, fan_out = w.shape
        out_p = _round_up(fan_out, _LANE)
        w_p = jnp.zeros((prev_in, out_p), jnp.bfloat16).at[:fan_in, :fan_out].set(
            w.astype(jnp.bfloat16))
        b_p = jnp.zeros((1, out_p), jnp.float32).at[:, :fan_out].set(
            b.astype(jnp.float32))
        padded.append((w_p, b_p))
        prev_in = out_p
    return padded


@functools.partial(
    jax.jit,
    static_argnames=("n_features", "batch_tile", "feature_tile",
                     "out_dtype", "vmem_limit_bytes"))
def george_sae_dropout_forward(x, padded_params, n_features, *,
                               batch_tile=512, feature_tile=2048,
                               out_dtype=jnp.float32,
                               vmem_limit_bytes=56 * 1024 * 1024):
    """forward(x) == decode(x).  x: (B, z_dim) float32;
    padded_params from pad_decoder_params()."""
    B, z_dim = x.shape
    (w1, b1), (w2, b2), (w3, b3), (w4, b4) = padded_params
    n_feat_pad = w4.shape[1]
    k_in = w4.shape[0]                        # 256 (padded layer-3 width)

    # ---- batch tiling: balanced tiles (no > tile-size padding on ragged B) ----
    n_tiles_b = max(1, _cdiv(B, batch_tile))
    tb = _round_up(_cdiv(B, n_tiles_b), _SUBLANE)
    n_tiles_b = _cdiv(B, tb)

    # ---- feature (N) tiling: tn multiple of 128, balanced ----
    n_tiles_n = max(1, _cdiv(n_feat_pad, feature_tile))
    tn = _round_up(_cdiv(n_feat_pad, n_tiles_n), _LANE)
    n_tiles_n = _cdiv(n_feat_pad, tn)

    # v7x has 2 TensorCores; "parallel" grid axes shard across them, so make
    # sure there are at least 2 grid steps whenever there is enough batch work.
    if n_tiles_b * n_tiles_n == 1 and B > _SUBLANE:
        tb = _round_up(_cdiv(B, 2), _SUBLANE)
        n_tiles_b = _cdiv(B, tb)

    B_pad = n_tiles_b * tb
    if B_pad != B:
        x = jnp.pad(x, ((0, B_pad - B), (0, 0)))

    N_pad = n_tiles_n * tn
    if N_pad != n_feat_pad:
        w4 = jnp.pad(w4, ((0, 0), (0, N_pad - n_feat_pad)))
        b4 = jnp.pad(b4, ((0, 0), (0, N_pad - n_feat_pad)))

    def invariant_spec(a):
        # Grid-invariant full-array block: fetched into VMEM once; single
        # buffer (no point double-buffering a block that never changes).
        return pl.BlockSpec(a.shape, lambda b, n: (0, 0),
                            pipeline_mode=pl.Buffered(buffer_count=1))

    # Advisory cost estimate for XLA's scheduler around the custom call.
    flops = 2 * B_pad * (n_tiles_n * (z_dim * w1.shape[1]
                                      + w2.shape[0] * w2.shape[1]
                                      + w3.shape[0] * w3.shape[1])
                         + k_in * N_pad)
    bytes_accessed = (x.size * x.dtype.itemsize
                      + sum(a.size * a.dtype.itemsize
                            for a in (w1, b1, w2, b2, w3, b3, w4, b4))
                      + B_pad * N_pad * jnp.dtype(out_dtype).itemsize)

    out = pl.pallas_call(
        _decoder_kernel,
        out_shape=jax.ShapeDtypeStruct((B_pad, N_pad), out_dtype),
        grid=(n_tiles_b, n_tiles_n),
        in_specs=[
            pl.BlockSpec((tb, z_dim), lambda b, n: (b, 0)),
            invariant_spec(w1), invariant_spec(b1),
            invariant_spec(w2), invariant_spec(b2),
            invariant_spec(w3), invariant_spec(b3),
            pl.BlockSpec((k_in, tn), lambda b, n: (0, n)),   # w4: tiled along N
            pl.BlockSpec((1, tn), lambda b, n: (0, n)),      # b4: tiled along N
        ],
        out_specs=pl.BlockSpec((tb, tn), lambda b, n: (b, n)),
        compiler_params=pltpu.CompilerParams(
            dimension_semantics=("parallel", "parallel"),
            vmem_limit_bytes=vmem_limit_bytes),
        cost_estimate=pl.CostEstimate(flops=int(flops),
                                      transcendentals=0,
                                      bytes_accessed=int(bytes_accessed)),
    )(x, w1, b1, w2, b2, w3, b3, w4, b4)

    # Strip batch / feature padding only if any was applied.
    if B_pad != B or N_pad != n_features:
        out = out[:B, :n_features]
    return out


def _reference_bf16(x, params):
    """Same math as the kernel: bf16 weights/activations, f32 accumulation."""
    h = x.astype(jnp.bfloat16)
    y = None
    for i, (w, b) in enumerate(params):
        y = jnp.dot(h, w.astype(jnp.bfloat16),
                    preferred_element_type=jnp.float32) + b
        if i < len(params) - 1:
            h = _leaky_relu(y).astype(jnp.bfloat16)
    return jnp.maximum(y, 0.0)


if __name__ == "__main__":
    n_features = 64
    z_dim = 8
    batch = 16

    key = jax.random.PRNGKey(0)
    key_x, key_p = jax.random.split(key)
    x = jax.random.normal(key_x, (batch, z_dim), dtype=jnp.float32)
    params = init_decoder_params(key_p, n_features, z_dim)
    padded_params = pad_decoder_params(params)

    out = george_sae_dropout_forward(x, padded_params, n_features)
    out = jax.block_until_ready(out)

    ref = _reference_bf16(x, params)
    assert out.shape == (batch, n_features)
    assert jnp.allclose(out, ref, atol=2e-3, rtol=2e-3), "mismatch vs reference"

    print("KERNEL_OK")
</pallas_src>

<mosaic_0001>
module attributes {stable_mosaic.version = 11 : i64} {
  func.func @_decoder_kernel(%arg0: i32, %arg1: i32, %arg2: memref<8x8xf32, #tpu.memory_space<vmem>>, %arg3: memref<8x128xbf16, #tpu.memory_space<vmem>>, %arg4: memref<1x128xf32, #tpu.memory_space<vmem>>, %arg5: memref<128x128xbf16, #tpu.memory_space<vmem>>, %arg6: memref<1x128xf32, #tpu.memory_space<vmem>>, %arg7: memref<128x256xbf16, #tpu.memory_space<vmem>>, %arg8: memref<1x256xf32, #tpu.memory_space<vmem>>, %arg9: memref<256x128xbf16, #tpu.memory_space<vmem>>, %arg10: memref<1x128xf32, #tpu.memory_space<vmem>>, %arg11: memref<8x128xf32, #tpu.memory_space<vmem>>) attributes {dimension_semantics = [#tpu.dimension_semantics<parallel>, #tpu.dimension_semantics<parallel>], iteration_bounds = array<i64: 2, 1>, scalar_prefetch = 0 : i64, scratch_operands = 0 : i64, tpu.core_type = #tpu.core_type<tc>, window_params = [{transform_indices = @transform_0, window_bounds = array<i64: 8, 8>}, {pipeline_mode = #tpu.pipeline_mode<synchronous>, transform_indices = @transform_1, window_bounds = array<i64: 8, 128>}, {pipeline_mode = #tpu.pipeline_mode<synchronous>, transform_indices = @transform_2, window_bounds = array<i64: 1, 128>}, {pipeline_mode = #tpu.pipeline_mode<synchronous>, transform_indices = @transform_3, window_bounds = array<i64: 128, 128>}, {pipeline_mode = #tpu.pipeline_mode<synchronous>, transform_indices = @transform_4, window_bounds = array<i64: 1, 128>}, {pipeline_mode = #tpu.pipeline_mode<synchronous>, transform_indices = @transform_5, window_bounds = array<i64: 128, 256>}, {pipeline_mode = #tpu.pipeline_mode<synchronous>, transform_indices = @transform_6, window_bounds = array<i64: 1, 256>}, {transform_indices = @transform_7, window_bounds = array<i64: 256, 128>}, {transform_indices = @transform_8, window_bounds = array<i64: 1, 128>}, {transform_indices = @transform_9, window_bounds = array<i64: 8, 128>}]} {
    %c0 = arith.constant 0 : index
    %c0_0 = arith.constant 0 : index
    %0 = vector.load %arg2[%c0, %c0_0] : memref<8x8xf32, #tpu.memory_space<vmem>>, vector<8x8xf32>
    %1 = arith.truncf %0 : vector<8x8xf32> to vector<8x8xbf16>
    %c0_1 = arith.constant 0 : index
    %c0_2 = arith.constant 0 : index
    %2 = vector.load %arg3[%c0_1, %c0_2] : memref<8x128xbf16, #tpu.memory_space<vmem>>, vector<8x128xbf16>
    %cst = arith.constant dense<0.000000e+00> : vector<8x128xf32>
    %3 = tpu.matmul %1, %2, %cst {dimension_numbers = #tpu.dot_dimension_numbers<[1], [0], [0], [1], [0, 0, 1, 1], [], []>} : vector<8x8xbf16>, vector<8x128xbf16>, vector<8x128xf32> -> vector<8x128xf32>
    %c0_3 = arith.constant 0 : index
    %c0_4 = arith.constant 0 : index
    %4 = vector.load %arg4[%c0_3, %c0_4] : memref<1x128xf32, #tpu.memory_space<vmem>>, vector<1x128xf32>
    %5 = vector.broadcast %4 : vector<1x128xf32> to vector<8x128xf32>
    %6 = arith.addf %3, %5 : vector<8x128xf32>
    %cst_5 = arith.constant 0.00999999977 : f32
    %7 = vector.broadcast %cst_5 : f32 to vector<8x128xf32>
    %8 = arith.mulf %7, %6 : vector<8x128xf32>
    %9 = arith.maximumf %6, %8 : vector<8x128xf32>
    %10 = arith.truncf %9 : vector<8x128xf32> to vector<8x128xbf16>
    %c0_6 = arith.constant 0 : index
    %c0_7 = arith.constant 0 : index
    %11 = vector.load %arg5[%c0_6, %c0_7] : memref<128x128xbf16, #tpu.memory_space<vmem>>, vector<128x128xbf16>
    %cst_8 = arith.constant dense<0.000000e+00> : vector<8x128xf32>
    %12 = tpu.matmul %10, %11, %cst_8 {dimension_numbers = #tpu.dot_dimension_numbers<[1], [0], [0], [1], [0, 0, 1, 1], [], []>} : vector<8x128xbf16>, vector<128x128xbf16>, vector<8x128xf32> -> vector<8x128xf32>
    %c0_9 = arith.constant 0 : index
    %c0_10 = arith.constant 0 : index
    %13 = vector.load %arg6[%c0_9, %c0_10] : memref<1x128xf32, #tpu.memory_space<vmem>>, vector<1x128xf32>
    %14 = vector.broadcast %13 : vector<1x128xf32> to vector<8x128xf32>
    %15 = arith.addf %12, %14 : vector<8x128xf32>
    %cst_11 = arith.constant 0.00999999977 : f32
    %16 = vector.broadcast %cst_11 : f32 to vector<8x128xf32>
    %17 = arith.mulf %16, %15 : vector<8x128xf32>
    %18 = arith.maximumf %15, %17 : vector<8x128xf32>
    %19 = arith.truncf %18 : vector<8x128xf32> to vector<8x128xbf16>
    %c0_12 = arith.constant 0 : index
    %c0_13 = arith.constant 0 : index
    %20 = vector.load %arg7[%c0_12, %c0_13] : memref<128x256xbf16, #tpu.memory_space<vmem>>, vector<128x256xbf16>
    %cst_14 = arith.constant dense<0.000000e+00> : vector<8x256xf32>
    %21 = tpu.matmul %19, %20, %cst_14 {dimension_numbers = #tpu.dot_dimension_numbers<[1], [0], [0], [1], [0, 0, 1, 1], [], []>} : vector<8x128xbf16>, vector<128x256xbf16>, vector<8x256xf32> -> vector<8x256xf32>
    %c0_15 = arith.constant 0 : index
    %c0_16 = arith.constant 0 : index
    %22 = vector.load %arg8[%c0_15, %c0_16] : memref<1x256xf32, #tpu.memory_space<vmem>>, vector<1x256xf32>
    %23 = vector.broadcast %22 : vector<1x256xf32> to vector<8x256xf32>
    %24 = arith.addf %21, %23 : vector<8x256xf32>
    %cst_17 = arith.constant 0.00999999977 : f32
    %25 = vector.broadcast %cst_17 : f32 to vector<8x256xf32>
    %26 = arith.mulf %25, %24 : vector<8x256xf32>
    %27 = arith.maximumf %24, %26 : vector<8x256xf32>
    %28 = arith.truncf %27 : vector<8x256xf32> to vector<8x256xbf16>
    %c0_18 = arith.constant 0 : index
    %c0_19 = arith.constant 0 : index
    %29 = vector.load %arg9[%c0_18, %c0_19] : memref<256x128xbf16, #tpu.memory_space<vmem>>, vector<256x128xbf16>
    %cst_20 = arith.constant dense<0.000000e+00> : vector<8x128xf32>
    %30 = tpu.matmul %28, %29, %cst_20 {dimension_numbers = #tpu.dot_dimension_numbers<[1], [0], [0], [1], [0, 0, 1, 1], [], []>} : vector<8x256xbf16>, vector<256x128xbf16>, vector<8x128xf32> -> vector<8x128xf32>
    %c0_21 = arith.constant 0 : index
    %c0_22 = arith.constant 0 : index
    %31 = vector.load %arg10[%c0_21, %c0_22] : memref<1x128xf32, #tpu.memory_space<vmem>>, vector<1x128xf32>
    %32 = vector.broadcast %31 : vector<1x128xf32> to vector<8x128xf32>
    %33 = arith.addf %30, %32 : vector<8x128xf32>
    %cst_23 = arith.constant 0.000000e+00 : f32
    %34 = vector.broadcast %cst_23 : f32 to vector<8x128xf32>
    %35 = arith.maximumf %33, %34 : vector<8x128xf32>
    %c0_24 = arith.constant 0 : index
    %c0_25 = arith.constant 0 : index
    %36 = vector.load %arg11[%c0_24, %c0_25] : memref<8x128xf32, #tpu.memory_space<vmem>>, vector<8x128xf32>
    tpu.vector_store %arg11[%c0_24, %c0_25], %35 {strides = array<i32>} : memref<8x128xf32, #tpu.memory_space<vmem>>, vector<8x128xf32>,
    return
  }
  func.func @transform_0(%arg0: i32, %arg1: i32) -> (i32, i32) {
    %c0_i32 = arith.constant 0 : i32
    %c0_i32_0 = arith.constant 0 : i32
    return %arg0, %c0_i32 : i32, i32
  }
  func.func @transform_1(%arg0: i32, %arg1: i32) -> (i32, i32) {
    %c0_i32 = arith.constant 0 : i32
    %c0_i32_0 = arith.constant 0 : i32
    %c0_i32_1 = arith.constant 0 : i32
    return %c0_i32, %c0_i32_0 : i32, i32
  }
  func.func @transform_2(%arg0: i32, %arg1: i32) -> (i32, i32) {
    %c0_i32 = arith.constant 0 : i32
    %c0_i32_0 = arith.constant 0 : i32
    %c0_i32_1 = arith.constant 0 : i32
    return %c0_i32, %c0_i32_0 : i32, i32
  }
  func.func @transform_3(%arg0: i32, %arg1: i32) -> (i32, i32) {
    %c0_i32 = arith.constant 0 : i32
    %c0_i32_0 = arith.constant 0 : i32
    %c0_i32_1 = arith.constant 0 : i32
    return %c0_i32, %c0_i32_0 : i32, i32
  }
  func.func @transform_4(%arg0: i32, %arg1: i32) -> (i32, i32) {
    %c0_i32 = arith.constant 0 : i32
    %c0_i32_0 = arith.constant 0 : i32
    %c0_i32_1 = arith.constant 0 : i32
    return %c0_i32, %c0_i32_0 : i32, i32
  }
  func.func @transform_5(%arg0: i32, %arg1: i32) -> (i32, i32) {
    %c0_i32 = arith.constant 0 : i32
    %c0_i32_0 = arith.constant 0 : i32
    %c0_i32_1 = arith.constant 0 : i32
    return %c0_i32, %c0_i32_0 : i32, i32
  }
  func.func @transform_6(%arg0: i32, %arg1: i32) -> (i32, i32) {
    %c0_i32 = arith.constant 0 : i32
    %c0_i32_0 = arith.constant 0 : i32
    %c0_i32_1 = arith.constant 0 : i32
    return %c0_i32, %c0_i32_0 : i32, i32
  }
  func.func @transform_7(%arg0: i32, %arg1: i32) -> (i32, i32) {
    %c0_i32 = arith.constant 0 : i32
    %c0_i32_0 = arith.constant 0 : i32
    return %c0_i32, %arg1 : i32, i32
  }
  func.func @transform_8(%arg0: i32, %arg1: i32) -> (i32, i32) {
    %c0_i32 = arith.constant 0 : i32
    %c0_i32_0 = arith.constant 0 : i32
    return %c0_i32, %arg1 : i32, i32
  }
  func.func @transform_9(%arg0: i32, %arg1: i32) -> (i32, i32) {
    %c0_i32 = arith.constant 0 : i32
    return %arg0, %arg1 : i32, i32
  }
}

</mosaic_0001>

<llo_original>
// kernel: george_sae_dropout_forward.1
$region0: #{george_sae_dropout_forward.1}
  #allocation0 [shape = 'u32[]', space=smem, size = 0x4, offset = 0x4, fixed_abs, tag = 'smem constant byte address 0x4 - core index']
  #allocation1 [shape = 'u32[144,128]{1,0:T(1,128)}', space=vmem, size = 0x12000, scoped, tag = 'internal scratch']
  %s0 = inlined_call_operand.vmem [shape: f32[16,8], index: 0, kind: input, shape index: {}]
  %s1 = inlined_call_operand.vmem [shape: bf16[8,128], index: 1, kind: input, shape index: {}]
  %s2 = inlined_call_operand.vmem [shape: f32[1,128], index: 2, kind: input, shape index: {}]
  %s3 = inlined_call_operand.hbm [shape: bf16[128,128], index: 3, kind: input, shape index: {}]
  %s4 = inlined_call_operand.vmem [shape: f32[1,128], index: 4, kind: input, shape index: {}]
  %s5 = inlined_call_operand.hbm [shape: bf16[128,256], index: 5, kind: input, shape index: {}]
  %s6 = inlined_call_operand.vmem [shape: f32[1,256], index: 6, kind: input, shape index: {}]
  %s7 = inlined_call_operand.hbm [shape: bf16[256,128], index: 7, kind: input, shape index: {}]
  %s8 = inlined_call_operand.vmem [shape: f32[1,128], index: 8, kind: input, shape index: {}]
  %s9 = inlined_call_operand.hbm [shape: f32[16,128], index: 9, kind: output, shape index: {}]
  %s10 = sld [smem:[#allocation0]]
  $region81: #{george_sae_dropout_forward.1} parent=0
    _
  %s12 = ssub.s32 1, %s10
  %s13 = scalar_select 0, %s12, %s10
  $region1: #{george_sae_dropout_forward.1} parent=0
    #allocation2 [shape = 'u8[32768]{0}', space=vmem, size = 0x8000, scoped, tag = 'input window, operand 3, single buffered']
    #allocation3 [shape = 's32[2]{0}', space=sflag, size = 0x8, scoped, tag = 'scoped memory for george_sae_dropout_forward.1']
    #allocation4 [shape = 's32[2]{0}', space=sflag, size = 0x8, scoped, tag = 'scoped memory for george_sae_dropout_forward.1']
    #allocation5 [shape = 'u8[65536]{0}', space=vmem, size = 0x10000, scoped, tag = 'input window, operand 5, single buffered']
    #allocation6 [shape = 's32[1]{0}', space=sflag, size = 0x4, scoped, tag = 'scoped memory for george_sae_dropout_forward.1']
    #allocation7 [shape = 'u8[65536]{0}', space=vmem, size = 0x10000, scoped, tag = 'input window, operand 7, single buffered']
    #allocation8 [shape = 'u8[8192]{0}', space=vmem, size = 0x2000, scoped, tag = 'output window, operand 0']
    %14 = vsyncpa [#allocation3], 0
    %15 = vsyncpa [#allocation6], 0
    %16 = vsyncpa [#allocation4], 0
    %s17 = scalar_lea.sflag [#allocation4], 1
    %18 = vsyncpa %s17, 0
    loop: start=0, step=1, limit=4
    $region2: #{george_sae_dropout_forward.1} parent=1 // loop_pre_header
      _
    $region3: #{george_sae_dropout_forward.1} parent=1 // loop_header
      %s20 = sphi 0, %s24
      %p21 = scmp.ge.s32.totalorder %s20, 4
      %s27 = sphi 0, %s39
      %s28 = sphi 0, %s35
      %s29 = sphi 0, %s27
      %s30 = sphi 0, %s28
      %s31 = sphi 0, %s29
      %s32 = sphi 0, %s30
      %s42 = sphi 0, %s44
      %s45 = sphi 0, %s42
      %s46 = sphi 0, %s45
      %s62 = sphi 0, %s46
      %s66 = sphi 0, %s66
      %s68 = sphi 0, %s66
      %s69 = sphi 0, %s68
      %s83 = sphi 0, %s69
      %s87 = sphi 0, %s87
      %s89 = sphi 0, %s87
      %s90 = sphi 0, %s89
      %s104 = sphi 0, %s90
      %s108 = sphi 0, %s108
      %s110 = sphi 0, %s108
      %s111 = sphi 0, %s110
      %s125 = sphi 0, %s111
      %s129 = sphi 0, %s129
      %s131 = sphi 0, %s129
      %s132 = sphi 0, %s131
      %s146 = sphi 0, %s132
      %s150 = sphi 0, %s150
      %s152 = sphi 0, %s150
      %s153 = sphi 0, %s152
      %s167 = sphi 0, %s153
      %s171 = sphi 0, %s171
      %s173 = sphi 0, %s171
      %s174 = sphi 0, %s173
      %s188 = sphi 0, %s174
      %s194 = sphi 0, %s196
      %s197 = sphi 0, %s194
      %s198 = sphi 0, %s197
      %s214 = sphi 0, %s198
      %s220 = sphi 0, %s222
      %s223 = sphi 0, %s220
      %s224 = sphi 0, %s223
      %s240 = sphi 0, %s224
      %s248 = sphi 0, %s250
      %s251 = sphi 0, %s248
      %s252 = sphi 0, %s251
      %s268 = sphi 0, %s252
    $region4: #{george_sae_dropout_forward.1} parent=1 // loop_header_branch
      %23 = sbr.rel (%p21) target = $region8
    $region5: #{george_sae_dropout_forward.1} parent=1 // loop_body
      %s25 = ssub.s32 %s20, 1
      %s26 = ssub.s32 %s20, 2
      %s33 = sadd.s32 1, %s28
      %p34 = scmp.ge.s32.totalorder %s33, 1
      %s35 = scalar_select %p34, 0, %s33
      %s36 = sadd.s32 1, %s27
      %s37 = scalar_select %p34, %s36, %s27
      %p38 = scmp.ge.s32.totalorder %s37, 2
      %s39 = scalar_select %p38, 0, %s37
      %s40 = ssub.s32 %s27, %s39
      %p41 = scmp.eq.s32.totalorder %s40, 0
      %s43 = sadd.s32 %s42, 1
      %s44 = scalar_select %p41, %s42, %s43
      %p47 = pneg %p41
      %p48 = scmp.eq.s32.totalorder %s20, 1
      %p49 = por %p47, %p48
      %p50 = scmp.ne.s32.totalorder %s42, %s45
      %p51 = scmp.eq.s32.totalorder %s20, 0
      %p52 = por %p50, %p51
      %p53 = scmp.ne.s32.totalorder %s42, %s45
      %p54 = scmp.eq.s32.totalorder %s25, 1
      %p55 = por %p53, %p54
      %p56 = scmp.ne.s32.totalorder %s45, %s46
      %p57 = scmp.eq.s32.totalorder %s25, 0
      %p58 = por %p56, %p57
      %p59 = scmp.ne.s32.totalorder %s45, %s46
      %p60 = scmp.eq.s32.totalorder %s26, 1
      %p61 = por %p59, %p60
      %p63 = scmp.ne.s32.totalorder %s46, %s62
      %p64 = scmp.eq.s32.totalorder %s26, 0
      %p65 = por %p63, %p64
      %s67 = sadd.s32 %s66, 1
      %p70 = scmp.eq.s32.totalorder %s20, 1
      %p71 = scmp.ne.s32.totalorder %s66, %s68
      %p72 = scmp.eq.s32.totalorder %s20, 0
      %p73 = por %p71, %p72
      %p74 = scmp.ne.s32.totalorder %s66, %s68
      %p75 = scmp.eq.s32.totalorder %s25, 1
      %p76 = por %p74, %p75
      %p77 = scmp.ne.s32.totalorder %s68, %s69
      %p78 = scmp.eq.s32.totalorder %s25, 0
      %p79 = por %p77, %p78
      %p80 = scmp.ne.s32.totalorder %s68, %s69
      %p81 = scmp.eq.s32.totalorder %s26, 1
      %p82 = por %p80, %p81
      %p84 = scmp.ne.s32.totalorder %s69, %s83
      %p85 = scmp.eq.s32.totalorder %s26, 0
      %p86 = por %p84, %p85
      %s88 = sadd.s32 %s87, 1
      %p91 = scmp.eq.s32.totalorder %s20, 1
      %p92 = scmp.ne.s32.totalorder %s87, %s89
      %p93 = scmp.eq.s32.totalorder %s20, 0
      %p94 = por %p92, %p93
      %p95 = scmp.ne.s32.totalorder %s87, %s89
      %p96 = scmp.eq.s32.totalorder %s25, 1
      %p97 = por %p95, %p96
      %p98 = scmp.ne.s32.totalorder %s89, %s90
      %p99 = scmp.eq.s32.totalorder %s25, 0
      %p100 = por %p98, %p99
      %p101 = scmp.ne.s32.totalorder %s89, %s90
      %p102 = scmp.eq.s32.totalorder %s26, 1
      %p103 = por %p101, %p102
      %p105 = scmp.ne.s32.totalorder %s90, %s104
      %p106 = scmp.eq.s32.totalorder %s26, 0
      %p107 = por %p105, %p106
      %s109 = sadd.s32 %s108, 1
      %p112 = scmp.eq.s32.totalorder %s20, 1
      %p113 = scmp.ne.s32.totalorder %s108, %s110
      %p114 = scmp.eq.s32.totalorder %s20, 0
      %p115 = por %p113, %p114
      %p116 = scmp.ne.s32.totalorder %s108, %s110
      %p117 = scmp.eq.s32.totalorder %s25, 1
      %p118 = por %p116, %p117
      %p119 = scmp.ne.s32.totalorder %s110, %s111
      %p120 = scmp.eq.s32.totalorder %s25, 0
      %p121 = por %p119, %p120
      %p122 = scmp.ne.s32.totalorder %s110, %s111
      %p123 = scmp.eq.s32.totalorder %s26, 1
      %p124 = por %p122, %p123
      %p126 = scmp.ne.s32.totalorder %s111, %s125
      %p127 = scmp.eq.s32.totalorder %s26, 0
      %p128 = por %p126, %p127
      %s130 = sadd.s32 %s129, 1
      %p133 = scmp.eq.s32.totalorder %s20, 1
      %p134 = scmp.ne.s32.totalorder %s129, %s131
      %p135 = scmp.eq.s32.totalorder %s20, 0
      %p136 = por %p134, %p135
      %p137 = scmp.ne.s32.totalorder %s129, %s131
      %p138 = scmp.eq.s32.totalorder %s25, 1
      %p139 = por %p137, %p138
      %p140 = scmp.ne.s32.totalorder %s131, %s132
      %p141 = scmp.eq.s32.totalorder %s25, 0
      %p142 = por %p140, %p141
      %p143 = scmp.ne.s32.totalorder %s131, %s132
      %p144 = scmp.eq.s32.totalorder %s26, 1
      %p145 = por %p143, %p144
      %p147 = scmp.ne.s32.totalorder %s132, %s146
      %p148 = scmp.eq.s32.totalorder %s26, 0
      %p149 = por %p147, %p148
      %s151 = sadd.s32 %s150, 1
      %p154 = scmp.eq.s32.totalorder %s20, 1
      %p155 = scmp.ne.s32.totalorder %s150, %s152
      %p156 = scmp.eq.s32.totalorder %s20, 0
      %p157 = por %p155, %p156
      %p158 = scmp.ne.s32.totalorder %s150, %s152
      %p159 = scmp.eq.s32.totalorder %s25, 1
      %p160 = por %p158, %p159
      %p161 = scmp.ne.s32.totalorder %s152, %s153
      %p162 = scmp.eq.s32.totalorder %s25, 0
      %p163 = por %p161, %p162
      %p164 = scmp.ne.s32.totalorder %s152, %s153
      %p165 = scmp.eq.s32.totalorder %s26, 1
      %p166 = por %p164, %p165
      %p168 = scmp.ne.s32.totalorder %s153, %s167
      %p169 = scmp.eq.s32.totalorder %s26, 0
      %p170 = por %p168, %p169
      %s172 = sadd.s32 %s171, 1
      %p175 = scmp.eq.s32.totalorder %s20, 1
      %p176 = scmp.ne.s32.totalorder %s171, %s173
      %p177 = scmp.eq.s32.totalorder %s20, 0
      %p178 = por %p176, %p177
      %p179 = scmp.ne.s32.totalorder %s171, %s173
      %p180 = scmp.eq.s32.totalorder %s25, 1
      %p181 = por %p179, %p180
      %p182 = scmp.ne.s32.totalorder %s173, %s174
      %p183 = scmp.eq.s32.totalorder %s25, 0
      %p184 = por %p182, %p183
      %p185 = scmp.ne.s32.totalorder %s173, %s174
      %p186 = scmp.eq.s32.totalorder %s26, 1
      %p187 = por %p185, %p186
      %p189 = scmp.ne.s32.totalorder %s174, %s188
      %p190 = scmp.eq.s32.totalorder %s26, 0
      %p191 = por %p189, %p190
      %s192 = ssub.s32 %s28, %s35
      %p193 = scmp.eq.s32.totalorder %s192, 0
      %s195 = sadd.s32 %s194, 1
      %s196 = scalar_select %p193, %s194, %s195
      %p199 = pneg %p193
      %p200 = scmp.eq.s32.totalorder %s20, 1
      %p201 = por %p199, %p200
      %p202 = scmp.ne.s32.totalorder %s194, %s197
      %p203 = scmp.eq.s32.totalorder %s20, 0
      %p204 = por %p202, %p203
      %p205 = scmp.ne.s32.totalorder %s194, %s197
      %p206 = scmp.eq.s32.totalorder %s25, 1
      %p207 = por %p205, %p206
      %p208 = scmp.ne.s32.totalorder %s197, %s198
      %p209 = scmp.eq.s32.totalorder %s25, 0
      %p210 = por %p208, %p209
      %p211 = scmp.ne.s32.totalorder %s197, %s198
      %p212 = scmp.eq.s32.totalorder %s26, 1
      %p213 = por %p211, %p212
      %p215 = scmp.ne.s32.totalorder %s198, %s214
      %p216 = scmp.eq.s32.totalorder %s26, 0
      %p217 = por %p215, %p216
      %s218 = ssub.s32 %s28, %s35
      %p219 = scmp.eq.s32.totalorder %s218, 0
      %s221 = sadd.s32 %s220, 1
      %s222 = scalar_select %p219, %s220, %s221
      %p225 = pneg %p219
      %p226 = scmp.eq.s32.totalorder %s20, 1
      %p227 = por %p225, %p226
      %p228 = scmp.ne.s32.totalorder %s220, %s223
      %p229 = scmp.eq.s32.totalorder %s20, 0
      %p230 = por %p228, %p229
      %p231 = scmp.ne.s32.totalorder %s220, %s223
      %p232 = scmp.eq.s32.totalorder %s25, 1
      %p233 = por %p231, %p232
      %p234 = scmp.ne.s32.totalorder %s223, %s224
      %p235 = scmp.eq.s32.totalorder %s25, 0
      %p236 = por %p234, %p235
      %p237 = scmp.ne.s32.totalorder %s223, %s224
      %p238 = scmp.eq.s32.totalorder %s26, 1
      %p239 = por %p237, %p238
      %p241 = scmp.ne.s32.totalorder %s224, %s240
      %p242 = scmp.eq.s32.totalorder %s26, 0
      %p243 = por %p241, %p242
      %s244 = ssub.s32 %s27, %s39
      %s245 = ssub.s32 %s28, %s35
      %s246 = sor.u32 %s244, %s245
      %p247 = scmp.eq.s32.totalorder %s246, 0
      %s249 = sadd.s32 %s248, 1
      %s250 = scalar_select %p247, %s248, %s249
      %p253 = pneg %p247
      %p254 = scmp.eq.s32.totalorder %s20, 1
      %p255 = por %p253, %p254
      %p256 = scmp.ne.s32.totalorder %s248, %s251
      %p257 = scmp.eq.s32.totalorder %s20, 0
      %p258 = por %p256, %p257
      %p259 = scmp.ne.s32.totalorder %s248, %s251
      %p260 = scmp.eq.s32.totalorder %s25, 1
      %p261 = por %p259, %p260
      %p262 = scmp.ne.s32.totalorder %s251, %s252
      %p263 = scmp.eq.s32.totalorder %s25, 0
      %p264 = por %p262, %p263
      %p265 = scmp.ne.s32.totalorder %s251, %s252
      %p266 = scmp.eq.s32.totalorder %s26, 1
      %p267 = por %p265, %p266
      %p269 = scmp.ne.s32.totalorder %s252, %s268
      %p270 = scmp.eq.s32.totalorder %s26, 0
      %p271 = por %p269, %p270
      %p272 = scmp.le.s32.totalorder 1, %s20
      %p273 = scmp.lt.s32.totalorder %s20, 3
      %p274 = pnand %p272, %p273
      %p275 = pneg %p274
      // Predicated region
      $region9: #{george_sae_dropout_forward.1} parent=5 // pred_check
        _
      $region10: #{george_sae_dropout_forward.1} parent=5 // pred_check_branch
        %277 = sbr.rel (%p274) target = $region12
      $region11: #{george_sae_dropout_forward.1} parent=5 // pred_region
        %s278 = ssub.s32 %s20, 1
        // Predicated region
        $region13: #{george_sae_dropout_forward.1} parent=11 // pred_check
          %p279 = pneg %p79
        $region14: #{george_sae_dropout_forward.1} parent=11 // pred_check_branch
          %281 = sbr.rel (%p279) target = $region16
        $region15: #{george_sae_dropout_forward.1} parent=11 // pred_region
          _
        $region16: #{george_sae_dropout_forward.1} parent=11 // pred_fallthru
          _
        // Predicated region
        $region17: #{george_sae_dropout_forward.1} parent=11 // pred_check
          %p282 = pneg %p100
        $region18: #{george_sae_dropout_forward.1} parent=11 // pred_check_branch
          %284 = sbr.rel (%p282) target = $region20
        $region19: #{george_sae_dropout_forward.1} parent=11 // pred_region
          _
        $region20: #{george_sae_dropout_forward.1} parent=11 // pred_fallthru
          _
        // Predicated region
        $region21: #{george_sae_dropout_forward.1} parent=11 // pred_check
          %p285 = pneg %p121
        $region22: #{george_sae_dropout_forward.1} parent=11 // pred_check_branch
          %287 = sbr.rel (%p285) target = $region24
        $region23: #{george_sae_dropout_forward.1} parent=11 // pred_region
          %s289 = ssub.s32 1024, 1024
          %290 = vsyncadd [#allocation3], %s289
          %s291 = sshll.u32 [#allocation2], 4
          %s292 = int_to_ptr.vmem [resolvable:$true] %s291
          %297 = dma.hbm_to_vmem [thread:$0]  %s3, 1024, %s292, [#allocation3], 64, 64, 4
        $region24: #{george_sae_dropout_forward.1} parent=11 // pred_fallthru
          _
        // Predicated region
        $region25: #{george_sae_dropout_forward.1} parent=11 // pred_check
          %p298 = pneg %p142
        $region26: #{george_sae_dropout_forward.1} parent=11 // pred_check_branch
          %300 = sbr.rel (%p298) target = $region28
        $region27: #{george_sae_dropout_forward.1} parent=11 // pred_region
          _
        $region28: #{george_sae_dropout_forward.1} parent=11 // pred_fallthru
          _
        // Predicated region
        $region29: #{george_sae_dropout_forward.1} parent=11 // pred_check
          %p301 = pneg %p163
        $region30: #{george_sae_dropout_forward.1} parent=11 // pred_check_branch
          %303 = sbr.rel (%p301) target = $region32
        $region31: #{george_sae_dropout_forward.1} parent=11 // pred_region
          %s305 = ssub.s32 2048, 2048
          %306 = vsyncadd [#allocation6], %s305
          %s307 = sshll.u32 [#allocation5], 4
          %s308 = int_to_ptr.vmem [resolvable:$true] %s307
          %313 = dma.hbm_to_vmem [thread:$0]  %s5, 2048, %s308, [#allocation6], 128, 128, 8
        $region32: #{george_sae_dropout_forward.1} parent=11 // pred_fallthru
          _
        // Predicated region
        $region33: #{george_sae_dropout_forward.1} parent=11 // pred_check
          %p314 = pneg %p184
        $region34: #{george_sae_dropout_forward.1} parent=11 // pred_check_branch
          %316 = sbr.rel (%p314) target = $region36
        $region35: #{george_sae_dropout_forward.1} parent=11 // pred_region
          _
        $region36: #{george_sae_dropout_forward.1} parent=11 // pred_fallthru
          _
        // Predicated region
        $region37: #{george_sae_dropout_forward.1} parent=11 // pred_check
          %p317 = pneg %p210
        $region38: #{george_sae_dropout_forward.1} parent=11 // pred_check_branch
          %319 = sbr.rel (%p317) target = $region40
        $region39: #{george_sae_dropout_forward.1} parent=11 // pred_region
          %s321 = ssub.s32 2048, 2048
          %322 = vsyncadd [#allocation6], %s321
          %s323 = smul.addr %s30, 64
          %s324 = scalar_lea.hbm %s7, %s323
          %s325 = sshll.u32 [#allocation7], 4
          %s326 = int_to_ptr.vmem [resolvable:$true] %s325
          %331 = dma.hbm_to_vmem [thread:$0]  %s324, 2048, %s326, [#allocation6], 64, 64, 4
        $region40: #{george_sae_dropout_forward.1} parent=11 // pred_fallthru
          _
        // Predicated region
        $region41: #{george_sae_dropout_forward.1} parent=11 // pred_check
          %p332 = pneg %p236
        $region42: #{george_sae_dropout_forward.1} parent=11 // pred_check_branch
          %334 = sbr.rel (%p332) target = $region44
        $region43: #{george_sae_dropout_forward.1} parent=11 // pred_region
          %p335 = scmp.lt.s32.totalorder %s30, 0
          %s336 = scalar_select %p335, %s30, 0
          %s337 = scalar_lea.vmem %s8, %s336
        $region44: #{george_sae_dropout_forward.1} parent=11 // pred_fallthru
          _
      $region12: #{george_sae_dropout_forward.1} parent=5 // pred_fallthru
        _
      %p338 = scmp.lt.s32.totalorder %s20, 2
      // Predicated region
      $region45: #{george_sae_dropout_forward.1} parent=5 // pred_check
        %p339 = pneg %p338
      $region46: #{george_sae_dropout_forward.1} parent=5 // pred_check_branch
        %341 = sbr.rel (%p339) target = $region48
      $region47: #{george_sae_dropout_forward.1} parent=5 // pred_region
        // Predicated region
        $region49: #{george_sae_dropout_forward.1} parent=47 // pred_check
          %p342 = pneg %p52
        $region50: #{george_sae_dropout_forward.1} parent=47 // pred_check_branch
          %344 = sbr.rel (%p342) target = $region52
        $region51: #{george_sae_dropout_forward.1} parent=47 // pred_region
          %p345 = scmp.lt.s32.totalorder %s27, 1
          %s346 = scalar_select %p345, %s27, 1
          %s347 = smul.addr %s346, 8
          %s348 = scalar_lea.vmem %s0, %s347
        $region52: #{george_sae_dropout_forward.1} parent=47 // pred_fallthru
          _
      $region48: #{george_sae_dropout_forward.1} parent=5 // pred_fallthru
        _
      %p349 = scmp.le.s32.totalorder 1, %s20
      %p350 = scmp.lt.s32.totalorder %s20, 3
      %p351 = pnand %p349, %p350
      %p352 = pneg %p351
      // Predicated region
      $region53: #{george_sae_dropout_forward.1} parent=5 // pred_check
        _
      $region54: #{george_sae_dropout_forward.1} parent=5 // pred_check_branch
        %354 = sbr.rel (%p351) target = $region56
      $region55: #{george_sae_dropout_forward.1} parent=5 // pred_region
        %s355 = ssub.s32 %s20, 1
        // Predicated region
        $region57: #{george_sae_dropout_forward.1} parent=55 // pred_check
          %p356 = pneg %p121
        $region58: #{george_sae_dropout_forward.1} parent=55 // pred_check_branch
          %358 = sbr.rel (%p356) target = $region60
        $region59: #{george_sae_dropout_forward.1} parent=55 // pred_region
          %359 = dma.done [#allocation3], 1024
        $region60: #{george_sae_dropout_forward.1} parent=55 // pred_fallthru
          _
        // Predicated region
        $region61: #{george_sae_dropout_forward.1} parent=55 // pred_check
          %p360 = pneg %p163
        $region62: #{george_sae_dropout_forward.1} parent=55 // pred_check_branch
          %362 = sbr.rel (%p360) target = $region64
        $region63: #{george_sae_dropout_forward.1} parent=55 // pred_region
          %363 = dma.done [#allocation6], 2048
        $region64: #{george_sae_dropout_forward.1} parent=55 // pred_fallthru
          _
        // Predicated region
        $region65: #{george_sae_dropout_forward.1} parent=55 // pred_check
          %p364 = pneg %p210
        $region66: #{george_sae_dropout_forward.1} parent=55 // pred_check_branch
          %366 = sbr.rel (%p364) target = $region68
        $region67: #{george_sae_dropout_forward.1} parent=55 // pred_region
          %367 = dma.done [#allocation6], 2048
        $region68: #{george_sae_dropout_forward.1} parent=55 // pred_fallthru
          _
        %p368 = scmp.lt.s32.totalorder %s29, 1
        %s369 = scalar_select %p368, %s29, 1
        %s370 = smul.addr %s369, 8
        %s371 = scalar_lea.vmem %s0, %s370
        %p372 = pneg %p58
        %p373 = pneg %p55
        %p374 = pneg %p79
        %p375 = pneg %p76
        %p376 = pneg %p100
        %p377 = pneg %p97
        %p378 = pneg %p121
        %p379 = pneg %p118
        %p380 = pneg %p142
        %p381 = pneg %p139
        %p382 = pneg %p163
        %p383 = pneg %p160
        %p384 = pneg %p184
        %p385 = pneg %p181
        %p386 = pneg %p210
        %p387 = pneg %p207
        %p388 = scmp.lt.s32.totalorder %s30, 0
        %s389 = scalar_select %p388, %s30, 0
        %s390 = scalar_lea.vmem %s8, %s389
        %p391 = pneg %p236
        %p392 = pneg %p233
        %p393 = pneg %p264
        %p394 = pneg %p261
        %s395 = sand.u32 %s251, 1
        %s396 = scalar_lea.sflag [#allocation4], %s395
        %s397 = sand.u32 %s251, 1
        %s398 = smul.addr %s397, 8
        %s399 = scalar_lea.vmem [#allocation8], %s398
        %p400 = scmp.lt.s32.totalorder %s29, 1
        %s401 = scalar_select %p400, %s29, 1
        %s402 = smul.addr %s401, 8
        %s403 = scalar_lea.vmem %s0, %s402
        %p404 = scmp.lt.s32.totalorder %s30, 0
        %s405 = scalar_select %p404, %s30, 0
        %s406 = scalar_lea.vmem %s8, %s405
        %v408 = vld [vmem:[%s403] sm:$0xff]
        %v409 = vpack.c.bf16 %v408, %v408
        %v410 = vld [vmem:[%s1] sm:$0xf]
        %v411 = vld [vmem:[%s2] sm:$0x1]
        %v413 = vlaneseq
        %v414 = vshrl.u32 %v413, 7
        %v415 = vsub.s32 0, %v414
        %v416 = vrot.slane %v411, %v415
        %vm418 = vcmask 64512
        %v420 = vsel %vm418, %v409, 0
        %vm422 = vcmask 1043456
        %v424 = vsel %vm422, %v410, 0
        %426 = vmatprep.subr.bf16.mxu0 0
        %427 = vmatpush1.bf16.msra.mxu0 %v424
        %428 = vmatprep.subr.bf16.mxu0 0
        %429 = vmatpush1.bf16.msra.mxu0 0
        %430 = vmatprep.subr.bf16.mxu0 0
        %431 = vmatpush1.bf16.msra.mxu0 0
        %432 = vmatprep.subr.bf16.mxu0 0
        %433 = vmatpush1.bf16.msra.mxu0 0
        %434 = vmatprep.subr.bf16.mxu0 0
        %435 = vmatpush1.bf16.msra.mxu0 0
        %436 = vmatprep.subr.bf16.mxu0 0
        %437 = vmatpush1.bf16.msra.mxu0 0
        %438 = vmatprep.subr.bf16.mxu0 0
        %439 = vmatpush1.bf16.msra.mxu0 0
        %440 = vmatprep.subr.bf16.mxu0 0
        %441 = vmatpush1.bf16.msra.mxu0 0
        %442 = vmatprep.subr.bf16.mxu0 0
        %443 = vmatpush1.bf16.msra.mxu0 0
        %444 = vmatprep.subr.bf16.mxu0 0
        %445 = vmatpush1.bf16.msra.mxu0 0
        %446 = vmatprep.subr.bf16.mxu0 0
        %447 = vmatpush1.bf16.msra.mxu0 0
        %448 = vmatprep.subr.bf16.mxu0 0
        %449 = vmatpush1.bf16.msra.mxu0 0
        %450 = vmatprep.subr.bf16.mxu0 0
        %451 = vmatpush1.bf16.msra.mxu0 0
        %452 = vmatprep.subr.bf16.mxu0 0
        %453 = vmatpush1.bf16.msra.mxu0 0
        %454 = vmatprep.subr.bf16.mxu0 0
        %455 = vmatpush1.bf16.msra.mxu0 0
        %456 = vmatprep.subr.bf16.mxu0 0
        %457 = vmatpush1.bf16.msra.mxu0 0
        %458 = vmatprep.mubr.bf16.mxu0 0
        %459 = vmatmul.mubr.bf16.gmra.mrb[0].mxu0 %v420
        %v460 = vpop.f32.mrb[0].mxu0
        %v461 = vadd.f32 %v416, %v460
        %v462 = vpop.f32.mrb[0].mxu0
        %v463 = vpop.f32.mrb[0].mxu0
        %v464 = vpop.f32.mrb[0].mxu0
        %465 = vdwg.mxu0
        %v466 = vmul.f32 %v461, 0.01
        %v467 = vmax.f32 %v461, %v466
        %v468 = vpack.c.bf16 %v467, %v467
        %v469 = vld [vmem:[#allocation2] sm:$0xf]
        %v470 = vld [vmem:[#allocation2 + $0x4] sm:$0xf]
        %v471 = vld [vmem:[#allocation2 + $0x8] sm:$0xf]
        %v472 = vld [vmem:[#allocation2 + $0xc] sm:$0xf]
        %v473 = vld [vmem:[#allocation2 + $0x10] sm:$0xf]
        %v474 = vld [vmem:[#allocation2 + $0x14] sm:$0xf]
        %v475 = vld [vmem:[#allocation2 + $0x18] sm:$0xf]
        %v476 = vld [vmem:[#allocation2 + $0x1c] sm:$0xf]
        %v477 = vld [vmem:[#allocation2 + $0x20] sm:$0xf]
        %v478 = vld [vmem:[#allocation2 + $0x24] sm:$0xf]
        %v479 = vld [vmem:[#allocation2 + $0x28] sm:$0xf]
        %v480 = vld [vmem:[#allocation2 + $0x2c] sm:$0xf]
        %v481 = vld [vmem:[#allocation2 + $0x30] sm:$0xf]
        %v482 = vld [vmem:[#allocation2 + $0x34] sm:$0xf]
        %v483 = vld [vmem:[#allocation2 + $0x38] sm:$0xf]
        %v484 = vld [vmem:[#allocation2 + $0x3c] sm:$0xf]
        %v485 = vld [vmem:[%s4] sm:$0x1]
        %v487 = vlaneseq
        %v488 = vshrl.u32 %v487, 7
        %v489 = vsub.s32 0, %v488
        %v490 = vrot.slane %v485, %v489
        %v508 = vunpack.c.l.b16 %v469
        %v509 = vunpack.c.l.b16 %v470
        %v510 = vunpack.c.l.b16 %v471
        %v511 = vunpack.c.l.b16 %v472
        %v512 = vunpack.c.l.b16 %v473
        %v513 = vunpack.c.l.b16 %v474
        %v514 = vunpack.c.l.b16 %v475
        %v515 = vunpack.c.l.b16 %v476
        %v516 = vunpack.c.l.b16 %v477
        %v517 = vunpack.c.l.b16 %v478
        %v518 = vunpack.c.l.b16 %v479
        %v519 = vunpack.c.l.b16 %v480
        %v520 = vunpack.c.l.b16 %v481
        %v521 = vunpack.c.l.b16 %v482
        %v522 = vunpack.c.l.b16 %v483
        %v523 = vunpack.c.l.b16 %v484
        %v524 = vpack.c.b16 %v509, %v508
        %v525 = vpack.c.b16 %v511, %v510
        %v526 = vpack.c.b16 %v513, %v512
        %v527 = vpack.c.b16 %v515, %v514
        %v528 = vpack.c.b16 %v517, %v516
        %v529 = vpack.c.b16 %v519, %v518
        %v530 = vpack.c.b16 %v521, %v520
        %v531 = vpack.c.b16 %v523, %v522
        %540 = vmatprep.subr.bf16.mxu0 0
        %541 = vmatpush1.bf16.msra.mxu0 %v524
        %542 = vmatprep.subr.bf16.mxu0 0
        %543 = vmatpush1.bf16.msra.mxu0 %v525
        %544 = vmatprep.subr.bf16.mxu0 0
        %545 = vmatpush1.bf16.msra.mxu0 %v526
        %546 = vmatprep.subr.bf16.mxu0 0
        %547 = vmatpush1.bf16.msra.mxu0 %v527
        %548 = vmatprep.subr.bf16.mxu0 0
        %549 = vmatpush1.bf16.msra.mxu0 %v528
        %550 = vmatprep.subr.bf16.mxu0 0
        %551 = vmatpush1.bf16.msra.mxu0 %v529
        %552 = vmatprep.subr.bf16.mxu0 0
        %553 = vmatpush1.bf16.msra.mxu0 %v530
        %554 = vmatprep.subr.bf16.mxu0 0
        %555 = vmatpush1.bf16.msra.mxu0 %v531
        %556 = vmatprep.subr.bf16.mxu0 0
        %557 = vmatpush1.bf16.msra.mxu0 0
        %558 = vmatprep.subr.bf16.mxu0 0
        %559 = vmatpush1.bf16.msra.mxu0 0
        %560 = vmatprep.subr.bf16.mxu0 0
        %561 = vmatpush1.bf16.msra.mxu0 0
        %562 = vmatprep.subr.bf16.mxu0 0
        %563 = vmatpush1.bf16.msra.mxu0 0
        %564 = vmatprep.subr.bf16.mxu0 0
        %565 = vmatpush1.bf16.msra.mxu0 0
        %566 = vmatprep.subr.bf16.mxu0 0
        %567 = vmatpush1.bf16.msra.mxu0 0
        %568 = vmatprep.subr.bf16.mxu0 0
        %569 = vmatpush1.bf16.msra.mxu0 0
        %570 = vmatprep.subr.bf16.mxu0 0
        %571 = vmatpush1.bf16.msra.mxu0 0
        %572 = vmatprep.mubr.bf16.mxu0 0
        %573 = vmatmul.mubr.bf16.gmra.mrb[0].mxu0 %v468
        %v574 = vpop.f32.mrb[0].mxu0
        %v575 = vadd.f32 %v490, %v574
        %v576 = vpop.f32.mrb[0].mxu0
        %v577 = vpop.f32.mrb[0].mxu0
        %v578 = vpop.f32.mrb[0].mxu0
        %579 = vdwg.mxu0
        %v580 = vmul.f32 %v575, 0.01
        %v581 = vmax.f32 %v575, %v580
        %v582 = vpack.c.bf16 %v581, %v581
        %v583 = vld [vmem:[#allocation5] sm:$0xff]
        %v584 = vld [vmem:[#allocation5 + $0x8] sm:$0xff]
        %v585 = vld [vmem:[#allocation5 + $0x10] sm:$0xff]
        %v586 = vld [vmem:[#allocation5 + $0x18] sm:$0xff]
        %v587 = vld [vmem:[#allocation5 + $0x20] sm:$0xff]
        %v588 = vld [vmem:[#allocation5 + $0x28] sm:$0xff]
        %v589 = vld [vmem:[#allocation5 + $0x30] sm:$0xff]
        %v590 = vld [vmem:[#allocation5 + $0x38] sm:$0xff]
        %v591 = vld [vmem:[#allocation5 + $0x40] sm:$0xff]
        %v592 = vld [vmem:[#allocation5 + $0x48] sm:$0xff]
        %v593 = vld [vmem:[#allocation5 + $0x50] sm:$0xff]
        %v594 = vld [vmem:[#allocation5 + $0x58] sm:$0xff]
        %v595 = vld [vmem:[#allocation5 + $0x60] sm:$0xff]
        %v596 = vld [vmem:[#allocation5 + $0x68] sm:$0xff]
        %v597 = vld [vmem:[#allocation5 + $0x70] sm:$0xff]
        %v598 = vld [vmem:[#allocation5 + $0x78] sm:$0xff]
        %v599 = vld [vmem:[%s6] sm:$0x3]
        %v601 = vlaneseq
        %v602 = vshrl.u32 %v601, 7
        %v603 = vsub.s32 0, %v602
        %v604 = vrot.slane %v599, %v603
        %v605 = vlaneseq
        %v606 = vshrl.u32 %v605, 7
        %v607 = vsub.s32 1, %v606
        %v608 = vrot.slane %v599, %v607
        %v627 = vunpack.c.l.b16 %v583
        %v628 = vunpack.c.h.b16 %v583
        %v629 = vunpack.c.l.b16 %v584
        %v630 = vunpack.c.h.b16 %v584
        %v631 = vunpack.c.l.b16 %v585
        %v632 = vunpack.c.h.b16 %v585
        %v633 = vunpack.c.l.b16 %v586
        %v634 = vunpack.c.h.b16 %v586
        %v635 = vunpack.c.l.b16 %v587
        %v636 = vunpack.c.h.b16 %v587
        %v637 = vunpack.c.l.b16 %v588
        %v638 = vunpack.c.h.b16 %v588
        %v639 = vunpack.c.l.b16 %v589
        %v640 = vunpack.c.h.b16 %v589
        %v641 = vunpack.c.l.b16 %v590
        %v642 = vunpack.c.h.b16 %v590
        %v643 = vunpack.c.l.b16 %v591
        %v644 = vunpack.c.h.b16 %v591
        %v645 = vunpack.c.l.b16 %v592
        %v646 = vunpack.c.h.b16 %v592
        %v647 = vunpack.c.l.b16 %v593
        %v648 = vunpack.c.h.b16 %v593
        %v649 = vunpack.c.l.b16 %v594
        %v650 = vunpack.c.h.b16 %v594
        %v651 = vunpack.c.l.b16 %v595
        %v652 = vunpack.c.h.b16 %v595
        %v653 = vunpack.c.l.b16 %v596
        %v654 = vunpack.c.h.b16 %v596
        %v655 = vunpack.c.l.b16 %v597
        %v656 = vunpack.c.h.b16 %v597
        %v657 = vunpack.c.l.b16 %v598
        %v658 = vunpack.c.h.b16 %v598
        %v659 = vpack.c.b16 %v629, %v627
        %v660 = vpack.c.b16 %v630, %v628
        %v661 = vpack.c.b16 %v633, %v631
        %v662 = vpack.c.b16 %v634, %v632
        %v663 = vpack.c.b16 %v637, %v635
        %v664 = vpack.c.b16 %v638, %v636
        %v665 = vpack.c.b16 %v641, %v639
        %v666 = vpack.c.b16 %v642, %v640
        %v667 = vpack.c.b16 %v645, %v643
        %v668 = vpack.c.b16 %v646, %v644
        %v669 = vpack.c.b16 %v649, %v647
        %v670 = vpack.c.b16 %v650, %v648
        %v671 = vpack.c.b16 %v653, %v651
        %v672 = vpack.c.b16 %v654, %v652
        %v673 = vpack.c.b16 %v657, %v655
        %v674 = vpack.c.b16 %v658, %v656
        %691 = vmatprep.subr.bf16.mxu0 %v660
        %692 = vmatpush1.bf16.msra.mxu0 %v659
        %693 = vmatprep.subr.bf16.mxu0 %v662
        %694 = vmatpush1.bf16.msra.mxu0 %v661
        %695 = vmatprep.subr.bf16.mxu0 %v664
        %696 = vmatpush1.bf16.msra.mxu0 %v663
        %697 = vmatprep.subr.bf16.mxu0 %v666
        %698 = vmatpush1.bf16.msra.mxu0 %v665
        %699 = vmatprep.subr.bf16.mxu0 %v668
        %700 = vmatpush1.bf16.msra.mxu0 %v667
        %701 = vmatprep.subr.bf16.mxu0 %v670
        %702 = vmatpush1.bf16.msra.mxu0 %v669
        %703 = vmatprep.subr.bf16.mxu0 %v672
        %704 = vmatpush1.bf16.msra.mxu0 %v671
        %705 = vmatprep.subr.bf16.mxu0 %v674
        %706 = vmatpush1.bf16.msra.mxu0 %v673
        %707 = vmatprep.subr.bf16.mxu0 0
        %708 = vmatpush1.bf16.msra.mxu0 0
        %709 = vmatprep.subr.bf16.mxu0 0
        %710 = vmatpush1.bf16.msra.mxu0 0
        %711 = vmatprep.subr.bf16.mxu0 0
        %712 = vmatpush1.bf16.msra.mxu0 0
        %713 = vmatprep.subr.bf16.mxu0 0
        %714 = vmatpush1.bf16.msra.mxu0 0
        %715 = vmatprep.subr.bf16.mxu0 0
        %716 = vmatpush1.bf16.msra.mxu0 0
        %717 = vmatprep.subr.bf16.mxu0 0
        %718 = vmatpush1.bf16.msra.mxu0 0
        %719 = vmatprep.subr.bf16.mxu0 0
        %720 = vmatpush1.bf16.msra.mxu0 0
        %721 = vmatprep.subr.bf16.mxu0 0
        %722 = vmatpush1.bf16.msra.mxu0 0
        %723 = vmatprep.mubr.bf16.mxu0 0
        %724 = vmatmul.mubr.bf16.gmra.mrb[0].mxu0 %v582
        %v725 = vpop.f32.mrb[0].mxu0
        %v726 = vadd.f32 %v604, %v725
        %v727 = vpop.f32.mrb[0].mxu0
        %v728 = vadd.f32 %v608, %v727
        %v729 = vpop.f32.mrb[0].mxu0
        %v730 = vpop.f32.mrb[0].mxu0
        %731 = vdwg.mxu0
        %v732 = vmul.f32 %v726, 0.01
        %v733 = vmul.f32 %v728, 0.01
        %v734 = vmax.f32 %v726, %v732
        %v735 = vmax.f32 %v728, %v733
        %v736 = vpack.c.bf16 %v734, %v734
        %v737 = vpack.c.bf16 %v735, %v735
        %v738 = vld [vmem:[#allocation7] sm:$0xf]
        %v739 = vld [vmem:[#allocation7 + $0x4] sm:$0xf]
        %v740 = vld [vmem:[#allocation7 + $0x8] sm:$0xf]
        %v741 = vld [vmem:[#allocation7 + $0xc] sm:$0xf]
        %v742 = vld [vmem:[#allocation7 + $0x10] sm:$0xf]
        %v743 = vld [vmem:[#allocation7 + $0x14] sm:$0xf]
        %v744 = vld [vmem:[#allocation7 + $0x18] sm:$0xf]
        %v745 = vld [vmem:[#allocation7 + $0x1c] sm:$0xf]
        %v746 = vld [vmem:[#allocation7 + $0x20] sm:$0xf]
        %v747 = vld [vmem:[#allocation7 + $0x24] sm:$0xf]
        %v748 = vld [vmem:[#allocation7 + $0x28] sm:$0xf]
        %v749 = vld [vmem:[#allocation7 + $0x2c] sm:$0xf]
        %v750 = vld [vmem:[#allocation7 + $0x30] sm:$0xf]
        %v751 = vld [vmem:[#allocation7 + $0x34] sm:$0xf]
        %v752 = vld [vmem:[#allocation7 + $0x38] sm:$0xf]
        %v753 = vld [vmem:[#allocation7 + $0x3c] sm:$0xf]
        %v754 = vld [vmem:[#allocation7 + $0x40] sm:$0xf]
        %v755 = vld [vmem:[#allocation7 + $0x44] sm:$0xf]
        %v756 = vld [vmem:[#allocation7 + $0x48] sm:$0xf]
        %v757 = vld [vmem:[#allocation7 + $0x4c] sm:$0xf]
        %v758 = vld [vmem:[#allocation7 + $0x50] sm:$0xf]
        %v759 = vld [vmem:[#allocation7 + $0x54] sm:$0xf]
        %v760 = vld [vmem:[#allocation7 + $0x58] sm:$0xf]
        %v761 = vld [vmem:[#allocation7 + $0x5c] sm:$0xf]
        %v762 = vld [vmem:[#allocation7 + $0x60] sm:$0xf]
        %v763 = vld [vmem:[#allocation7 + $0x64] sm:$0xf]
        %v764 = vld [vmem:[#allocation7 + $0x68] sm:$0xf]
        %v765 = vld [vmem:[#allocation7 + $0x6c] sm:$0xf]
        %v766 = vld [vmem:[#allocation7 + $0x70] sm:$0xf]
        %v767 = vld [vmem:[#allocation7 + $0x74] sm:$0xf]
        %v768 = vld [vmem:[#allocation7 + $0x78] sm:$0xf]
        %v769 = vld [vmem:[#allocation7 + $0x7c] sm:$0xf]
        %v770 = vld [vmem:[%s406] sm:$0x1]
        %v772 = vlaneseq
        %v773 = vshrl.u32 %v772, 7
        %v774 = vsub.s32 0, %v773
        %v775 = vrot.slane %v770, %v774
        %v809 = vunpack.c.l.b16 %v738
        %v810 = vunpack.c.l.b16 %v739
        %v811 = vunpack.c.l.b16 %v740
        %v812 = vunpack.c.l.b16 %v741
        %v813 = vunpack.c.l.b16 %v742
        %v814 = vunpack.c.l.b16 %v743
        %v815 = vunpack.c.l.b16 %v744
        %v816 = vunpack.c.l.b16 %v745
        %v817 = vunpack.c.l.b16 %v746
        %v818 = vunpack.c.l.b16 %v747
        %v819 = vunpack.c.l.b16 %v748
        %v820 = vunpack.c.l.b16 %v749
        %v821 = vunpack.c.l.b16 %v750
        %v822 = vunpack.c.l.b16 %v751
        %v823 = vunpack.c.l.b16 %v752
        %v824 = vunpack.c.l.b16 %v753
        %v825 = vunpack.c.l.b16 %v754
        %v826 = vunpack.c.l.b16 %v755
        %v827 = vunpack.c.l.b16 %v756
        %v828 = vunpack.c.l.b16 %v757
        %v829 = vunpack.c.l.b16 %v758
        %v830 = vunpack.c.l.b16 %v759
        %v831 = vunpack.c.l.b16 %v760
        %v832 = vunpack.c.l.b16 %v761
        %v833 = vunpack.c.l.b16 %v762
        %v834 = vunpack.c.l.b16 %v763
        %v835 = vunpack.c.l.b16 %v764
        %v836 = vunpack.c.l.b16 %v765
        %v837 = vunpack.c.l.b16 %v766
        %v838 = vunpack.c.l.b16 %v767
        %v839 = vunpack.c.l.b16 %v768
        %v840 = vunpack.c.l.b16 %v769
        %v841 = vpack.c.b16 %v810, %v809
        %v842 = vpack.c.b16 %v812, %v811
        %v843 = vpack.c.b16 %v814, %v813
        %v844 = vpack.c.b16 %v816, %v815
        %v845 = vpack.c.b16 %v818, %v817
        %v846 = vpack.c.b16 %v820, %v819
        %v847 = vpack.c.b16 %v822, %v821
        %v848 = vpack.c.b16 %v824, %v823
        %v849 = vpack.c.b16 %v826, %v825
        %v850 = vpack.c.b16 %v828, %v827
        %v851 = vpack.c.b16 %v830, %v829
        %v852 = vpack.c.b16 %v832, %v831
        %v853 = vpack.c.b16 %v834, %v833
        %v854 = vpack.c.b16 %v836, %v835
        %v855 = vpack.c.b16 %v838, %v837
        %v856 = vpack.c.b16 %v840, %v839
        %873 = vmatprep.subr.bf16.mxu0 0
        %874 = vmatpush1.bf16.msra.mxu0 %v841
        %875 = vmatprep.subr.bf16.mxu0 0
        %876 = vmatpush1.bf16.msra.mxu0 %v842
        %877 = vmatprep.subr.bf16.mxu0 0
        %878 = vmatpush1.bf16.msra.mxu0 %v843
        %879 = vmatprep.subr.bf16.mxu0 0
        %880 = vmatpush1.bf16.msra.mxu0 %v844
        %881 = vmatprep.subr.bf16.mxu0 0
        %882 = vmatpush1.bf16.msra.mxu0 %v845
        %883 = vmatprep.subr.bf16.mxu0 0
        %884 = vmatpush1.bf16.msra.mxu0 %v846
        %885 = vmatprep.subr.bf16.mxu0 0
        %886 = vmatpush1.bf16.msra.mxu0 %v847
        %887 = vmatprep.subr.bf16.mxu0 0
        %888 = vmatpush1.bf16.msra.mxu0 %v848
        %889 = vmatprep.subr.bf16.mxu0 0
        %890 = vmatpush1.bf16.msra.mxu0 %v849
        %891 = vmatprep.subr.bf16.mxu0 0
        %892 = vmatpush1.bf16.msra.mxu0 %v850
        %893 = vmatprep.subr.bf16.mxu0 0
        %894 = vmatpush1.bf16.msra.mxu0 %v851
        %895 = vmatprep.subr.bf16.mxu0 0
        %896 = vmatpush1.bf16.msra.mxu0 %v852
        %897 = vmatprep.subr.bf16.mxu0 0
        %898 = vmatpush1.bf16.msra.mxu0 %v853
        %899 = vmatprep.subr.bf16.mxu0 0
        %900 = vmatpush1.bf16.msra.mxu0 %v854
        %901 = vmatprep.subr.bf16.mxu0 0
        %902 = vmatpush1.bf16.msra.mxu0 %v855
        %903 = vmatprep.subr.bf16.mxu0 0
        %904 = vmatpush1.bf16.msra.mxu0 %v856
        %905 = vmatprep.mubr.bf16.mxu0 %v737
        %906 = vmatmul.mubr.bf16.gmra.mrb[0].mxu0 %v736
        %v907 = vpop.f32.mrb[0].mxu0
        %v908 = vadd.f32 %v775, %v907
        %v909 = vpop.f32.mrb[0].mxu0
        %v910 = vpop.f32.mrb[0].mxu0
        %v911 = vpop.f32.mrb[0].mxu0
        %912 = vdwg.mxu0
        %v913 = vmax.f32 %v908, 0.0
        %914 = vst [vmem:[%s399] sm:$0xff] %v913
        %s915 = sand.u32 %s251, 1
        %s916 = scalar_lea.sflag [#allocation4], %s915
        %s917 = sand.u32 %s251, 1
        %s918 = smul.addr %s917, 8
        %s919 = scalar_lea.vmem [#allocation8], %s918
        // Predicated region
        $region69: #{george_sae_dropout_forward.1} parent=55 // pred_check
          %p920 = pneg %p261
        $region70: #{george_sae_dropout_forward.1} parent=55 // pred_check_branch
          %922 = sbr.rel (%p920) target = $region72
        $region71: #{george_sae_dropout_forward.1} parent=55 // pred_region
          %s924 = ssub.s32 128, 128
          %925 = vsyncadd %s916, %s924
          %s926 = sadd.s32 %s30, %s29
          %s927 = smul.addr %s926, 128
          %s928 = scalar_lea.hbm %s9, %s927
          %s930 = sshll.u32 %s919, 4
          %s931 = int_to_ptr.vmem [resolvable:$true] %s930
          %933 = dma.vmem_to_hbm [thread:$0]  %s931, 128, %s928, %s916
        $region72: #{george_sae_dropout_forward.1} parent=55 // pred_fallthru
          _
      $region56: #{george_sae_dropout_forward.1} parent=5 // pred_fallthru
        _
      %p934 = scmp.le.s32.totalorder 2, %s20
      // Predicated region
      $region73: #{george_sae_dropout_forward.1} parent=5 // pred_check
        %p935 = pneg %p934
      $region74: #{george_sae_dropout_forward.1} parent=5 // pred_check_branch
        %937 = sbr.rel (%p935) target = $region76
      $region75: #{george_sae_dropout_forward.1} parent=5 // pred_region
        %s938 = ssub.s32 %s20, 2
        // Predicated region
        $region77: #{george_sae_dropout_forward.1} parent=75 // pred_check
          %p939 = pneg %p267
        $region78: #{george_sae_dropout_forward.1} parent=75 // pred_check_branch
          %941 = sbr.rel (%p939) target = $region80
        $region79: #{george_sae_dropout_forward.1} parent=75 // pred_region
          %s942 = sand.u32 %s252, 1
          %s943 = scalar_lea.sflag [#allocation4], %s942
          %s944 = sand.u32 %s252, 1
          %s945 = smul.addr %s944, 8
          %s946 = scalar_lea.vmem [#allocation8], %s945
          %947 = dma.done %s943, 128
        $region80: #{george_sae_dropout_forward.1} parent=75 // pred_fallthru
          _
      $region76: #{george_sae_dropout_forward.1} parent=5 // pred_fallthru
        _
    $region6: #{george_sae_dropout_forward.1} parent=1 // loop_footer
      %s24 = sadd.s32 1, %s20
    $region7: #{george_sae_dropout_forward.1} parent=1 // loop_footer_branch
      %19 = sbr.rel target = $region3
    $region8: #{george_sae_dropout_forward.1} parent=1 // loop_exit
      _
    %948 = vsyncpa [#allocation3], 1
    %s949 = scalar_lea.sflag [#allocation3], 1
    %950 = vsyncpa %s949, 1
    %951 = vsyncpa [#allocation6], 1
    %952 = vsyncpa [#allocation4], 1
    %s953 = scalar_lea.sflag [#allocation4], 1
    %954 = vsyncpa %s953, 1

</llo_original>
